<compile_context>
chip_gen: v5e
topology: v5e:2x2
jax: 0.10.0
libtpu: 0.0.40
codegen_flags: <defaults>
</compile_context>

<pallas_src>
import functools

import jax
import jax.numpy as jnp
from jax.experimental import pallas as pl
from jax.experimental.pallas import tpu as pltpu


# ----------------------------------------------------------------------------
# Helpers
# ----------------------------------------------------------------------------
def _round_up(x, m):
    return ((x + m - 1) // m) * m


def _row_tile(n, *, cap, bytes_per_row, itemsize=4, budget=12 * 1024 * 1024):
    """Row tile: multiple of the sublane packing, capped by `cap` and by a
    double-buffered streaming VMEM budget.  For small N, aim for >=2 grid
    steps so both v7x TensorCores get work."""
    mult = 8 if itemsize >= 4 else (16 if itemsize == 2 else 32)
    tm = min(cap, _round_up(max(n, 1), mult))
    max_tm = max(mult, (budget // max(bytes_per_row, 1)) // mult * mult)
    tm = min(tm, max_tm)
    if n > mult and tm >= n:
        tm = max(mult, _round_up(pl.cdiv(n, 2), mult))
    return tm


def _spatial_tile(hw, c, *, budget=12 * 1024 * 1024, cap=2048):
    """Lane tile for the NCHW-native kernel (multiple of 128, or the full
    spatial extent when it is < 128)."""
    if hw <= 128:
        return hw
    max_tw = max(128, budget // max(1, 16 * c))
    tw = min(hw, cap, max_tw)
    return max(128, (tw // 128) * 128)


_ROWS_PARAMS = pltpu.CompilerParams(
    dimension_semantics=("parallel",),
    vmem_limit_bytes=32 * 1024 * 1024,
)
_MAP_PARAMS = pltpu.CompilerParams(
    dimension_semantics=("parallel", "parallel"),
    vmem_limit_bytes=32 * 1024 * 1024,
)


# ----------------------------------------------------------------------------
# Pallas kernels
# ----------------------------------------------------------------------------
def _l2norm_rows_kernel(x_ref, o_ref):
    # x_ref: (TM, C) rows, channels on lanes (C == full array dim, no padding).
    x = x_ref[...].astype(jnp.float32)
    xe = x + 1e-7
    s = jnp.sum(xe * xe, axis=1, keepdims=True)                 # XLU reduce
    o_ref[...] = (x * jax.lax.rsqrt(s)).astype(o_ref.dtype)     # EUP rsqrt


def _l2norm_nchw_kernel(x_ref, o_ref):
    # x_ref: (1, C, TW) NCHW-native block; reduce over channels (sublanes).
    x = x_ref[...].astype(jnp.float32)
    xe = x + 1e-7
    s = jnp.sum(xe * xe, axis=1, keepdims=True)                 # (1, 1, TW)
    o_ref[...] = (x * jax.lax.rsqrt(s)).astype(o_ref.dtype)


def _mlp_l2norm_kernel(x_ref, w1_ref, b1_ref, w2_ref, b2_ref, o_ref, *, pad_corr):
    # x_ref: (TM, Cinp) f32 (padded lanes are zero); w1/w2 are bf16, lane-dense
    # (padded rows/cols zero); biases are f32.  Padded output lanes are exactly
    # zero, so the unmasked squared-sum exceeds the true one by pad_corr.
    x = x_ref[...].astype(jnp.bfloat16)
    h = jnp.dot(x, w1_ref[...], preferred_element_type=jnp.float32) + b1_ref[...]
    h = jnp.maximum(h, 0.0)
    y = (jnp.dot(h.astype(jnp.bfloat16), w2_ref[...],
                 preferred_element_type=jnp.float32) + b2_ref[...])
    ye = y + 1e-7
    s = jnp.sum(ye * ye, axis=1, keepdims=True)
    if pad_corr:
        s = s - pad_corr
    o_ref[...] = (y * jax.lax.rsqrt(s)).astype(o_ref.dtype)


# ----------------------------------------------------------------------------
# pallas_call wrappers
# ----------------------------------------------------------------------------
def l2norm_rows_pallas(x):
    """x: (N, C) -> (N, C); per-row x / sqrt(sum((x+1e-7)^2)).  No padding."""
    n, c = x.shape
    itemsize = jnp.dtype(x.dtype).itemsize
    tm = _row_tile(n, cap=1024, bytes_per_row=4 * c * itemsize, itemsize=itemsize)
    return pl.pallas_call(
        _l2norm_rows_kernel,
        out_shape=jax.ShapeDtypeStruct((n, c), x.dtype),
        grid_spec=pltpu.PrefetchScalarGridSpec(
            num_scalar_prefetch=0,
            grid=(pl.cdiv(n, tm),),
            in_specs=[pl.BlockSpec((tm, c), lambda i: (i, 0))],
            out_specs=pl.BlockSpec((tm, c), lambda i: (i, 0)),
        ),
        compiler_params=_ROWS_PARAMS,
    )(x)


def l2norm_nchw_pallas(x3):
    """x3: (B, C, HW) -> same shape; per-pixel normalize over C.  NCHW-native:
    no transpose, no channel padding, one read + one write of real data."""
    b, c, hw = x3.shape
    tw = _spatial_tile(hw, c)
    return pl.pallas_call(
        _l2norm_nchw_kernel,
        out_shape=jax.ShapeDtypeStruct((b, c, hw), x3.dtype),
        grid_spec=pltpu.PrefetchScalarGridSpec(
            num_scalar_prefetch=0,
            grid=(b, pl.cdiv(hw, tw)),
            in_specs=[pl.BlockSpec((1, c, tw), lambda i, j: (i, 0, j))],
            out_specs=pl.BlockSpec((1, c, tw), lambda i, j: (i, 0, j)),
        ),
        compiler_params=_MAP_PARAMS,
    )(x3)


def mlp_l2norm_pallas(x, w1p, b1p, w2p, b2p, nc_real):
    """x: (N, Cin) -> (N, nc_real): Linear -> ReLU -> Linear -> L2 normalize.
    Weights pre-padded to lane-dense shapes and stored in bf16."""
    n, c = x.shape
    cin_pad, nc_pad = w1p.shape
    if c != cin_pad:
        # Channel padding only (tiny sampled tensor); rows are never padded.
        x = jnp.pad(x, ((0, 0), (0, cin_pad - c)))
    itemsize = jnp.dtype(x.dtype).itemsize
    tm = _row_tile(n, cap=256, bytes_per_row=2 * (cin_pad + nc_pad) * itemsize,
                   itemsize=itemsize)
    pad_corr = float((nc_pad - nc_real) * 1e-14)
    out = pl.pallas_call(
        functools.partial(_mlp_l2norm_kernel, pad_corr=pad_corr),
        out_shape=jax.ShapeDtypeStruct((n, nc_pad), x.dtype),
        grid_spec=pltpu.PrefetchScalarGridSpec(
            num_scalar_prefetch=0,
            grid=(pl.cdiv(n, tm),),
            in_specs=[
                pl.BlockSpec((tm, cin_pad), lambda i: (i, 0)),
                pl.BlockSpec((cin_pad, nc_pad), lambda i: (0, 0)),
                pl.BlockSpec((1, nc_pad), lambda i: (0, 0)),
                pl.BlockSpec((nc_pad, nc_pad), lambda i: (0, 0)),
                pl.BlockSpec((1, nc_pad), lambda i: (0, 0)),
            ],
            out_specs=pl.BlockSpec((tm, nc_pad), lambda i: (i, 0)),
        ),
        compiler_params=_ROWS_PARAMS,
    )(x, w1p, b1p, w2p, b2p)
    return out[:, :nc_real] if nc_real != nc_pad else out


# ----------------------------------------------------------------------------
# PatchSampleF forward (glue in plain JAX, hot path in Pallas)
# ----------------------------------------------------------------------------
class PatchSampleF:
    def __init__(self, use_mlp=False, init_type="normal", init_gain=0.02,
                 nc=256, seed=0):
        self.use_mlp = use_mlp
        self.init_type = init_type
        self.init_gain = init_gain
        self.nc = nc
        self.mlp_init = False
        self._seed = seed
        self.mlps = {}       # feat_id -> padded bf16 weights / f32 biases
        self.mlps_raw = {}   # feat_id -> unpadded f32 weights (reference)

    def _create_mlp(self, feats):
        # Deterministic "normal" init: W ~ N(0, init_gain), b = 0
        # (matches init_net(init_type='normal', init_gain=0.02)).
        key = jax.random.PRNGKey(self._seed)
        nc_pad = _round_up(max(self.nc, 128), 128)
        for mlp_id, feat in enumerate(feats):
            input_nc = feat.shape[1]  # NCHW channel dim
            cin_pad = _round_up(max(input_nc, 128), 128)
            key, k1, k2 = jax.random.split(key, 3)
            w1 = (jax.random.normal(k1, (input_nc, self.nc), jnp.float32)
                  * self.init_gain)
            b1 = jnp.zeros((self.nc,), jnp.float32)
            w2 = (jax.random.normal(k2, (self.nc, self.nc), jnp.float32)
                  * self.init_gain)
            b2 = jnp.zeros((self.nc,), jnp.float32)
            self.mlps_raw[mlp_id] = (w1, b1, w2, b2)
            # Lane-dense, zero-padded; matmul operands stored as bf16.
            w1p = jnp.pad(w1, ((0, cin_pad - input_nc),
                               (0, nc_pad - self.nc))).astype(jnp.bfloat16)
            b1p = jnp.pad(b1, (0, nc_pad - self.nc)).reshape(1, nc_pad)
            w2p = jnp.pad(w2, ((0, nc_pad - self.nc),
                               (0, nc_pad - self.nc))).astype(jnp.bfloat16)
            b2p = jnp.pad(b2, (0, nc_pad - self.nc)).reshape(1, nc_pad)
            self.mlps[mlp_id] = (w1p, b1p, w2p, b2p)
        self.mlp_init = True

    def __call__(self, feats, num_patches=64, patch_ids=None, rng_key=None):
        return_ids = []
        return_feats = []
        if self.use_mlp and not self.mlp_init:
            self._create_mlp(feats)
        if rng_key is None:
            rng_key = jax.random.PRNGKey(1234)
        for feat_id, feat in enumerate(feats):
            B, C, H, W = feat.shape
            if num_patches > 0:
                if patch_ids is not None:
                    patch_id = jnp.asarray(patch_ids[feat_id], jnp.int32)
                else:
                    rng_key, sub = jax.random.split(rng_key)
                    perm = jax.random.permutation(sub, H * W)
                    patch_id = perm[: min(num_patches, H * W)].astype(jnp.int32)
                # Gather on the flat spatial axis, then transpose only the
                # tiny (B, C, P) result.
                # TODO(synk): fuse this gather into the kernel via scalar-
                # prefetched patch ids if xprof shows it on the critical path.
                feat_flat = feat.reshape(B, C, H * W)
                x_gather = jnp.take(feat_flat, patch_id, axis=2)   # (B, C, P)
                x_sample = jnp.transpose(x_gather, (0, 2, 1)).reshape(-1, C)
                if self.use_mlp:
                    w1p, b1p, w2p, b2p = self.mlps[feat_id]
                    x_sample = mlp_l2norm_pallas(x_sample, w1p, b1p, w2p, b2p,
                                                 self.nc)
                else:
                    x_sample = l2norm_rows_pallas(x_sample)
            else:
                patch_id = jnp.zeros((0,), jnp.int32)
                if self.use_mlp:
                    # Channels-last needed for the matmul; rare path.
                    x_flat = jnp.transpose(feat, (0, 2, 3, 1)).reshape(-1, C)
                    w1p, b1p, w2p, b2p = self.mlps[feat_id]
                    y = mlp_l2norm_pallas(x_flat, w1p, b1p, w2p, b2p, self.nc)
                    x_sample = jnp.transpose(
                        y.reshape(B, H, W, self.nc), (0, 3, 1, 2))
                else:
                    # NCHW-native normalize: no transpose, no channel padding.
                    x_sample = l2norm_nchw_pallas(
                        feat.reshape(B, C, H * W)).reshape(B, C, H, W)
            return_ids.append(patch_id)
            return_feats.append(x_sample)
        return return_feats, return_ids


# ----------------------------------------------------------------------------
# Pure-JAX references for the self-test
# ----------------------------------------------------------------------------
def _ref_l2norm(x, axis=1):
    s = jnp.sum((x + 1e-7) ** 2, axis=axis, keepdims=True)
    return x / jnp.sqrt(s)


def _ref_mlp_l2norm_bf16(x, w1, b1, w2, b2):
    h = jnp.dot(x.astype(jnp.bfloat16), w1.astype(jnp.bfloat16),
                preferred_element_type=jnp.float32) + b1
    h = jnp.maximum(h, 0.0)
    y = jnp.dot(h.astype(jnp.bfloat16), w2.astype(jnp.bfloat16),
                preferred_element_type=jnp.float32) + b2
    return _ref_l2norm(y)


if __name__ == "__main__":
    key = jax.random.PRNGKey(0)
    k1, k2 = jax.random.split(key)

    B, C, H, W = 2, 4, 16, 16
    nc = 32
    num_patches = 8

    feat0 = jax.random.normal(k1, (B, C, H, W), jnp.float32)
    feat1 = jax.random.normal(k2, (B, C, H, W), jnp.float32)
    feats = [feat0, feat1]

    patch_ids = [
        jnp.arange(num_patches, dtype=jnp.int32) * 3,
        jnp.arange(num_patches, dtype=jnp.int32) * 5 + 1,
    ]

    # --- use_mlp=True, sampled path (bf16 MXU matmuls) -----------------------
    model = PatchSampleF(use_mlp=True, init_type="normal", init_gain=0.02,
                         nc=nc, seed=0)
    out_feats, out_ids = model(feats, num_patches=num_patches,
                               patch_ids=patch_ids)
    for o in out_feats:
        jax.block_until_ready(o)
    for fid, feat in enumerate(feats):
        fr = jnp.transpose(feat, (0, 2, 3, 1)).reshape(B, H * W, C)
        xs = fr[:, patch_ids[fid], :].reshape(-1, C)
        w1, b1, w2, b2 = model.mlps_raw[fid]
        ref = _ref_mlp_l2norm_bf16(xs, w1, b1, w2, b2)
        assert out_feats[fid].shape == (B * num_patches, nc)
        assert jnp.allclose(out_feats[fid], ref, atol=1e-2, rtol=1e-2)

    # --- use_mlp=False, sampled path (un-padded row kernel) ------------------
    model2 = PatchSampleF(use_mlp=False)
    out_feats2, out_ids2 = model2(feats, num_patches=num_patches,
                                  patch_ids=patch_ids)
    for o in out_feats2:
        jax.block_until_ready(o)
    for fid, feat in enumerate(feats):
        fr = jnp.transpose(feat, (0, 2, 3, 1)).reshape(B, H * W, C)
        xs = fr[:, patch_ids[fid], :].reshape(-1, C)
        ref = _ref_l2norm(xs)
        assert out_feats2[fid].shape == (B * num_patches, C)
        assert jnp.allclose(out_feats2[fid], ref, atol=1e-5, rtol=1e-5)

    # --- random patch-id path (exercises in-call sampling) -------------------
    out_feats_r, out_ids_r = model2(feats, num_patches=num_patches,
                                    patch_ids=None)
    for o in out_feats_r:
        jax.block_until_ready(o)
    assert out_feats_r[0].shape == (B * num_patches, C)

    # --- num_patches == 0, no MLP (NCHW-native kernel) -----------------------
    out_feats3, _ = model2(feats, num_patches=0)
    for o in out_feats3:
        jax.block_until_ready(o)
    for fid, feat in enumerate(feats):
        ref = _ref_l2norm(feat, axis=1)
        assert out_feats3[fid].shape == (B, C, H, W)
        assert jnp.allclose(out_feats3[fid], ref, atol=1e-5, rtol=1e-5)

    # --- num_patches == 0 with MLP (multi-step grid) --------------------------
    out_feats4, _ = model(feats, num_patches=0)
    for o in out_feats4:
        jax.block_until_ready(o)
    assert out_feats4[0].shape == (B, nc, H, W)

    print("KERNEL_OK")
</pallas_src>

<mosaic_0001>
module attributes {stable_mosaic.version = 11 : i64} {
  func.func @_mlp_l2norm_kernel(%arg0: i32, %arg1: memref<8x128xf32, #tpu.memory_space<vmem>>, %arg2: memref<128x128xbf16, #tpu.memory_space<vmem>>, %arg3: memref<1x128xf32, #tpu.memory_space<vmem>>, %arg4: memref<128x128xbf16, #tpu.memory_space<vmem>>, %arg5: memref<1x128xf32, #tpu.memory_space<vmem>>, %arg6: memref<8x128xf32, #tpu.memory_space<vmem>>) attributes {dimension_semantics = [#tpu.dimension_semantics<parallel>], iteration_bounds = array<i64: 2>, scalar_prefetch = 0 : i64, scratch_operands = 0 : i64, tpu.core_type = #tpu.core_type<tc>, window_params = [{transform_indices = @transform_0, window_bounds = array<i64: 8, 128>}, {pipeline_mode = #tpu.pipeline_mode<synchronous>, transform_indices = @transform_1, window_bounds = array<i64: 128, 128>}, {pipeline_mode = #tpu.pipeline_mode<synchronous>, transform_indices = @transform_2, window_bounds = array<i64: 1, 128>}, {pipeline_mode = #tpu.pipeline_mode<synchronous>, transform_indices = @transform_3, window_bounds = array<i64: 128, 128>}, {pipeline_mode = #tpu.pipeline_mode<synchronous>, transform_indices = @transform_4, window_bounds = array<i64: 1, 128>}, {transform_indices = @transform_5, window_bounds = array<i64: 8, 128>}]} {
    %c0 = arith.constant 0 : index
    %c0_0 = arith.constant 0 : index
    %0 = vector.load %arg1[%c0, %c0_0] : memref<8x128xf32, #tpu.memory_space<vmem>>, vector<8x128xf32>
    %1 = arith.truncf %0 : vector<8x128xf32> to vector<8x128xbf16>
    %c0_1 = arith.constant 0 : index
    %c0_2 = arith.constant 0 : index
    %2 = vector.load %arg2[%c0_1, %c0_2] : memref<128x128xbf16, #tpu.memory_space<vmem>>, vector<128x128xbf16>
    %cst = arith.constant dense<0.000000e+00> : vector<8x128xf32>
    %3 = tpu.matmul %1, %2, %cst {dimension_numbers = #tpu.dot_dimension_numbers<[1], [0], [0], [1], [0, 0, 1, 1], [], []>} : vector<8x128xbf16>, vector<128x128xbf16>, vector<8x128xf32> -> vector<8x128xf32>
    %c0_3 = arith.constant 0 : index
    %c0_4 = arith.constant 0 : index
    %4 = vector.load %arg3[%c0_3, %c0_4] : memref<1x128xf32, #tpu.memory_space<vmem>>, vector<1x128xf32>
    %5 = vector.broadcast %4 : vector<1x128xf32> to vector<8x128xf32>
    %6 = arith.addf %3, %5 : vector<8x128xf32>
    %cst_5 = arith.constant 0.000000e+00 : f32
    %7 = vector.broadcast %cst_5 : f32 to vector<8x128xf32>
    %8 = arith.maximumf %6, %7 : vector<8x128xf32>
    %9 = arith.truncf %8 : vector<8x128xf32> to vector<8x128xbf16>
    %c0_6 = arith.constant 0 : index
    %c0_7 = arith.constant 0 : index
    %10 = vector.load %arg4[%c0_6, %c0_7] : memref<128x128xbf16, #tpu.memory_space<vmem>>, vector<128x128xbf16>
    %cst_8 = arith.constant dense<0.000000e+00> : vector<8x128xf32>
    %11 = tpu.matmul %9, %10, %cst_8 {dimension_numbers = #tpu.dot_dimension_numbers<[1], [0], [0], [1], [0, 0, 1, 1], [], []>} : vector<8x128xbf16>, vector<128x128xbf16>, vector<8x128xf32> -> vector<8x128xf32>
    %c0_9 = arith.constant 0 : index
    %c0_10 = arith.constant 0 : index
    %12 = vector.load %arg5[%c0_9, %c0_10] : memref<1x128xf32, #tpu.memory_space<vmem>>, vector<1x128xf32>
    %13 = vector.broadcast %12 : vector<1x128xf32> to vector<8x128xf32>
    %14 = arith.addf %11, %13 : vector<8x128xf32>
    %cst_11 = arith.constant 1.000000e-07 : f32
    %15 = vector.broadcast %cst_11 : f32 to vector<8x128xf32>
    %16 = arith.addf %14, %15 : vector<8x128xf32>
    %17 = arith.mulf %16, %16 : vector<8x128xf32>
    %cst_12 = arith.constant dense<0.000000e+00> : vector<8xf32>
    %18 = vector.multi_reduction <add>, %17, %cst_12 [1] : vector<8x128xf32> to vector<8xf32>
    %19 = vector.shape_cast %18 : vector<8xf32> to vector<8x1xf32>
    %cst_13 = arith.constant 9.59999983E-13 : f32
    %20 = vector.broadcast %cst_13 : f32 to vector<8x1xf32>
    %21 = arith.subf %19, %20 : vector<8x1xf32>
    %22 = math.rsqrt %21 : vector<8x1xf32>
    %23 = vector.broadcast %22 : vector<8x1xf32> to vector<8x128xf32>
    %24 = arith.mulf %14, %23 : vector<8x128xf32>
    %c0_14 = arith.constant 0 : index
    %c0_15 = arith.constant 0 : index
    %25 = vector.load %arg6[%c0_14, %c0_15] : memref<8x128xf32, #tpu.memory_space<vmem>>, vector<8x128xf32>
    tpu.vector_store %arg6[%c0_14, %c0_15], %24 {strides = array<i32>} : memref<8x128xf32, #tpu.memory_space<vmem>>, vector<8x128xf32>,
    return
  }
  func.func @transform_0(%arg0: i32) -> (i32, i32) {
    %c0_i32 = arith.constant 0 : i32
    %c0_i32_0 = arith.constant 0 : i32
    return %arg0, %c0_i32 : i32, i32
  }
  func.func @transform_1(%arg0: i32) -> (i32, i32) {
    %c0_i32 = arith.constant 0 : i32
    %c0_i32_0 = arith.constant 0 : i32
    %c0_i32_1 = arith.constant 0 : i32
    return %c0_i32, %c0_i32_0 : i32, i32
  }
  func.func @transform_2(%arg0: i32) -> (i32, i32) {
    %c0_i32 = arith.constant 0 : i32
    %c0_i32_0 = arith.constant 0 : i32
    %c0_i32_1 = arith.constant 0 : i32
    return %c0_i32, %c0_i32_0 : i32, i32
  }
  func.func @transform_3(%arg0: i32) -> (i32, i32) {
    %c0_i32 = arith.constant 0 : i32
    %c0_i32_0 = arith.constant 0 : i32
    %c0_i32_1 = arith.constant 0 : i32
    return %c0_i32, %c0_i32_0 : i32, i32
  }
  func.func @transform_4(%arg0: i32) -> (i32, i32) {
    %c0_i32 = arith.constant 0 : i32
    %c0_i32_0 = arith.constant 0 : i32
    %c0_i32_1 = arith.constant 0 : i32
    return %c0_i32, %c0_i32_0 : i32, i32
  }
  func.func @transform_5(%arg0: i32) -> (i32, i32) {
    %c0_i32 = arith.constant 0 : i32
    %c0_i32_0 = arith.constant 0 : i32
    return %arg0, %c0_i32 : i32, i32
  }
}

</mosaic_0001>

<llo_original>
// kernel: tpu_custom_call.1
$region0: #{tpu_custom_call.1}
  #allocation0 [shape = 'u32[]', space=smem, size = 0x4, offset = 0x4, fixed_abs, tag = 'smem constant byte address 0x4 - core index']
  #allocation1 [shape = 'u32[72,128]{1,0:T(1,128)}', space=vmem, size = 0x9000, scoped, tag = 'internal scratch']
  %s0 = inlined_call_operand.hbm [shape: f32[16,128], index: 0, kind: input, shape index: {}]
  %s1 = inlined_call_operand.hbm [shape: bf16[128,128], index: 1, kind: input, shape index: {}]
  %s2 = inlined_call_operand.vmem [shape: f32[1,128], index: 2, kind: input, shape index: {}]
  %s3 = inlined_call_operand.hbm [shape: bf16[128,128], index: 3, kind: input, shape index: {}]
  %s4 = inlined_call_operand.vmem [shape: f32[1,128], index: 4, kind: input, shape index: {}]
  %s5 = inlined_call_operand.hbm [shape: f32[16,128], index: 5, kind: output, shape index: {}]
  %s6 = sld [smem:[#allocation0]]
  $region65: #{tpu_custom_call.1} parent=0
    _
  %s8 = ssub.s32 1, %s6
  %s9 = scalar_select 0, %s8, %s6
  $region1: #{tpu_custom_call.1} parent=0
    #allocation2 [shape = 'u8[8192]{0}', space=vmem, size = 0x2000, scoped, tag = 'input window, operand 0']
    #allocation3 [shape = 's32[2]{0}', space=sflag, size = 0x8, scoped, tag = 'scoped memory for tpu_custom_call.1']
    #allocation4 [shape = 's32[2]{0}', space=sflag, size = 0x8, scoped, tag = 'scoped memory for tpu_custom_call.1']
    #allocation5 [shape = 'u8[32768]{0}', space=vmem, size = 0x8000, scoped, tag = 'input window, operand 1, single buffered']
    #allocation6 [shape = 's32[1]{0}', space=sflag, size = 0x4, scoped, tag = 'scoped memory for tpu_custom_call.1']
    #allocation7 [shape = 'u8[32768]{0}', space=vmem, size = 0x8000, scoped, tag = 'input window, operand 3, single buffered']
    #allocation8 [shape = 'u8[8192]{0}', space=vmem, size = 0x2000, scoped, tag = 'output window, operand 0']
    %10 = vsyncpa [#allocation3], 0
    %s11 = scalar_lea.sflag [#allocation3], 1
    %12 = vsyncpa %s11, 0
    %13 = vsyncpa [#allocation6], 0
    %14 = vsyncpa [#allocation4], 0
    %s15 = scalar_lea.sflag [#allocation4], 1
    %16 = vsyncpa %s15, 0
    loop: start=0, step=1, limit=4
    $region2: #{tpu_custom_call.1} parent=1 // loop_pre_header
      _
    $region3: #{tpu_custom_call.1} parent=1 // loop_header
      %s18 = sphi 0, %s22
      %p19 = scmp.ge.s32.totalorder %s18, 4
      %s28 = sphi 0, %s30
      %s31 = sphi 0, %s28
      %s32 = sphi 0, %s31
      %s48 = sphi 0, %s32
      %s52 = sphi 0, %s52
      %s54 = sphi 0, %s52
      %s55 = sphi 0, %s54
      %s69 = sphi 0, %s55
      %s73 = sphi 0, %s73
      %s75 = sphi 0, %s73
      %s76 = sphi 0, %s75
      %s90 = sphi 0, %s76
      %s94 = sphi 0, %s94
      %s96 = sphi 0, %s94
      %s97 = sphi 0, %s96
      %s111 = sphi 0, %s97
      %s115 = sphi 0, %s115
      %s117 = sphi 0, %s115
      %s118 = sphi 0, %s117
      %s132 = sphi 0, %s118
      %s138 = sphi 0, %s140
      %s141 = sphi 0, %s138
      %s142 = sphi 0, %s141
      %s158 = sphi 0, %s142
    $region4: #{tpu_custom_call.1} parent=1 // loop_header_branch
      %21 = sbr.rel (%p19) target = $region8
    $region5: #{tpu_custom_call.1} parent=1 // loop_body
      %s23 = ssub.s32 %s18, 1
      %s24 = ssub.s32 %s18, 2
      %s25 = sadd.s32 %s18, 1
      %s26 = ssub.s32 %s18, %s25
      %p27 = scmp.eq.s32.totalorder %s26, 0
      %s29 = sadd.s32 %s28, 1
      %s30 = scalar_select %p27, %s28, %s29
      %p33 = pneg %p27
      %p34 = scmp.eq.s32.totalorder %s18, 1
      %p35 = por %p33, %p34
      %p36 = scmp.ne.s32.totalorder %s28, %s31
      %p37 = scmp.eq.s32.totalorder %s18, 0
      %p38 = por %p36, %p37
      %p39 = scmp.ne.s32.totalorder %s28, %s31
      %p40 = scmp.eq.s32.totalorder %s23, 1
      %p41 = por %p39, %p40
      %p42 = scmp.ne.s32.totalorder %s31, %s32
      %p43 = scmp.eq.s32.totalorder %s23, 0
      %p44 = por %p42, %p43
      %p45 = scmp.ne.s32.totalorder %s31, %s32
      %p46 = scmp.eq.s32.totalorder %s24, 1
      %p47 = por %p45, %p46
      %p49 = scmp.ne.s32.totalorder %s32, %s48
      %p50 = scmp.eq.s32.totalorder %s24, 0
      %p51 = por %p49, %p50
      %s53 = sadd.s32 %s52, 1
      %p56 = scmp.eq.s32.totalorder %s18, 1
      %p57 = scmp.ne.s32.totalorder %s52, %s54
      %p58 = scmp.eq.s32.totalorder %s18, 0
      %p59 = por %p57, %p58
      %p60 = scmp.ne.s32.totalorder %s52, %s54
      %p61 = scmp.eq.s32.totalorder %s23, 1
      %p62 = por %p60, %p61
      %p63 = scmp.ne.s32.totalorder %s54, %s55
      %p64 = scmp.eq.s32.totalorder %s23, 0
      %p65 = por %p63, %p64
      %p66 = scmp.ne.s32.totalorder %s54, %s55
      %p67 = scmp.eq.s32.totalorder %s24, 1
      %p68 = por %p66, %p67
      %p70 = scmp.ne.s32.totalorder %s55, %s69
      %p71 = scmp.eq.s32.totalorder %s24, 0
      %p72 = por %p70, %p71
      %s74 = sadd.s32 %s73, 1
      %p77 = scmp.eq.s32.totalorder %s18, 1
      %p78 = scmp.ne.s32.totalorder %s73, %s75
      %p79 = scmp.eq.s32.totalorder %s18, 0
      %p80 = por %p78, %p79
      %p81 = scmp.ne.s32.totalorder %s73, %s75
      %p82 = scmp.eq.s32.totalorder %s23, 1
      %p83 = por %p81, %p82
      %p84 = scmp.ne.s32.totalorder %s75, %s76
      %p85 = scmp.eq.s32.totalorder %s23, 0
      %p86 = por %p84, %p85
      %p87 = scmp.ne.s32.totalorder %s75, %s76
      %p88 = scmp.eq.s32.totalorder %s24, 1
      %p89 = por %p87, %p88
      %p91 = scmp.ne.s32.totalorder %s76, %s90
      %p92 = scmp.eq.s32.totalorder %s24, 0
      %p93 = por %p91, %p92
      %s95 = sadd.s32 %s94, 1
      %p98 = scmp.eq.s32.totalorder %s18, 1
      %p99 = scmp.ne.s32.totalorder %s94, %s96
      %p100 = scmp.eq.s32.totalorder %s18, 0
      %p101 = por %p99, %p100
      %p102 = scmp.ne.s32.totalorder %s94, %s96
      %p103 = scmp.eq.s32.totalorder %s23, 1
      %p104 = por %p102, %p103
      %p105 = scmp.ne.s32.totalorder %s96, %s97
      %p106 = scmp.eq.s32.totalorder %s23, 0
      %p107 = por %p105, %p106
      %p108 = scmp.ne.s32.totalorder %s96, %s97
      %p109 = scmp.eq.s32.totalorder %s24, 1
      %p110 = por %p108, %p109
      %p112 = scmp.ne.s32.totalorder %s97, %s111
      %p113 = scmp.eq.s32.totalorder %s24, 0
      %p114 = por %p112, %p113
      %s116 = sadd.s32 %s115, 1
      %p119 = scmp.eq.s32.totalorder %s18, 1
      %p120 = scmp.ne.s32.totalorder %s115, %s117
      %p121 = scmp.eq.s32.totalorder %s18, 0
      %p122 = por %p120, %p121
      %p123 = scmp.ne.s32.totalorder %s115, %s117
      %p124 = scmp.eq.s32.totalorder %s23, 1
      %p125 = por %p123, %p124
      %p126 = scmp.ne.s32.totalorder %s117, %s118
      %p127 = scmp.eq.s32.totalorder %s23, 0
      %p128 = por %p126, %p127
      %p129 = scmp.ne.s32.totalorder %s117, %s118
      %p130 = scmp.eq.s32.totalorder %s24, 1
      %p131 = por %p129, %p130
      %p133 = scmp.ne.s32.totalorder %s118, %s132
      %p134 = scmp.eq.s32.totalorder %s24, 0
      %p135 = por %p133, %p134
      %s136 = ssub.s32 %s18, %s25
      %p137 = scmp.eq.s32.totalorder %s136, 0
      %s139 = sadd.s32 %s138, 1
      %s140 = scalar_select %p137, %s138, %s139
      %p143 = pneg %p137
      %p144 = scmp.eq.s32.totalorder %s18, 1
      %p145 = por %p143, %p144
      %p146 = scmp.ne.s32.totalorder %s138, %s141
      %p147 = scmp.eq.s32.totalorder %s18, 0
      %p148 = por %p146, %p147
      %p149 = scmp.ne.s32.totalorder %s138, %s141
      %p150 = scmp.eq.s32.totalorder %s23, 1
      %p151 = por %p149, %p150
      %p152 = scmp.ne.s32.totalorder %s141, %s142
      %p153 = scmp.eq.s32.totalorder %s23, 0
      %p154 = por %p152, %p153
      %p155 = scmp.ne.s32.totalorder %s141, %s142
      %p156 = scmp.eq.s32.totalorder %s24, 1
      %p157 = por %p155, %p156
      %p159 = scmp.ne.s32.totalorder %s142, %s158
      %p160 = scmp.eq.s32.totalorder %s24, 0
      %p161 = por %p159, %p160
      %p162 = scmp.le.s32.totalorder 1, %s18
      %p163 = scmp.lt.s32.totalorder %s18, 3
      %p164 = pnand %p162, %p163
      %p165 = pneg %p164
      // Predicated region
      $region9: #{tpu_custom_call.1} parent=5 // pred_check
        _
      $region10: #{tpu_custom_call.1} parent=5 // pred_check_branch
        %167 = sbr.rel (%p164) target = $region12
      $region11: #{tpu_custom_call.1} parent=5 // pred_region
        %s168 = ssub.s32 %s18, 1
        // Predicated region
        $region13: #{tpu_custom_call.1} parent=11 // pred_check
          %p169 = pneg %p65
        $region14: #{tpu_custom_call.1} parent=11 // pred_check_branch
          %171 = sbr.rel (%p169) target = $region16
        $region15: #{tpu_custom_call.1} parent=11 // pred_region
          %173 = vsyncadd [#allocation6], 0
          %s174 = sshll.u32 %s1, 4
          %s175 = int_to_ptr.hbm [resolvable:$true] %s174
          %s176 = sshll.u32 [#allocation5], 4
          %s177 = int_to_ptr.vmem [resolvable:$true] %s176
          %182 = dma.hbm_to_vmem [thread:$0]  %s175, 1024, %s177, [#allocation6], 64, 64, 4
        $region16: #{tpu_custom_call.1} parent=11 // pred_fallthru
          _
        // Predicated region
        $region17: #{tpu_custom_call.1} parent=11 // pred_check
          %p183 = pneg %p86
        $region18: #{tpu_custom_call.1} parent=11 // pred_check_branch
          %185 = sbr.rel (%p183) target = $region20
        $region19: #{tpu_custom_call.1} parent=11 // pred_region
          _
        $region20: #{tpu_custom_call.1} parent=11 // pred_fallthru
          _
        // Predicated region
        $region21: #{tpu_custom_call.1} parent=11 // pred_check
          %p186 = pneg %p107
        $region22: #{tpu_custom_call.1} parent=11 // pred_check_branch
          %188 = sbr.rel (%p186) target = $region24
        $region23: #{tpu_custom_call.1} parent=11 // pred_region
          %190 = vsyncadd [#allocation6], 0
          %s191 = sshll.u32 %s3, 4
          %s192 = int_to_ptr.hbm [resolvable:$true] %s191
          %s193 = sshll.u32 [#allocation7], 4
          %s194 = int_to_ptr.vmem [resolvable:$true] %s193
          %199 = dma.hbm_to_vmem [thread:$0]  %s192, 1024, %s194, [#allocation6], 64, 64, 4
        $region24: #{tpu_custom_call.1} parent=11 // pred_fallthru
          _
        // Predicated region
        $region25: #{tpu_custom_call.1} parent=11 // pred_check
          %p200 = pneg %p128
        $region26: #{tpu_custom_call.1} parent=11 // pred_check_branch
          %202 = sbr.rel (%p200) target = $region28
        $region27: #{tpu_custom_call.1} parent=11 // pred_region
          _
        $region28: #{tpu_custom_call.1} parent=11 // pred_fallthru
          _
      $region12: #{tpu_custom_call.1} parent=5 // pred_fallthru
        _
      %p203 = scmp.lt.s32.totalorder %s18, 2
      // Predicated region
      $region29: #{tpu_custom_call.1} parent=5 // pred_check
        %p204 = pneg %p203
      $region30: #{tpu_custom_call.1} parent=5 // pred_check_branch
        %206 = sbr.rel (%p204) target = $region32
      $region31: #{tpu_custom_call.1} parent=5 // pred_region
        // Predicated region
        $region33: #{tpu_custom_call.1} parent=31 // pred_check
          %p207 = pneg %p38
        $region34: #{tpu_custom_call.1} parent=31 // pred_check_branch
          %209 = sbr.rel (%p207) target = $region36
        $region35: #{tpu_custom_call.1} parent=31 // pred_region
          %s210 = sand.u32 %s28, 1
          %s211 = scalar_lea.sflag [#allocation3], %s210
          %s212 = sand.u32 %s28, 1
          %s213 = smul.addr %s212, 8
          %s214 = scalar_lea.vmem [#allocation2], %s213
          %216 = vsyncadd %s211, 0
          %s217 = smul.addr %s18, 8
          %s218 = scalar_lea.hbm %s0, %s217
          %s220 = sshll.u32 %s218, 4
          %s221 = int_to_ptr.hbm [resolvable:$true] %s220
          %s222 = sshll.u32 %s214, 4
          %s223 = int_to_ptr.vmem [resolvable:$true] %s222
          %225 = dma.hbm_to_vmem [thread:$0]  %s221, 128, %s223, %s211
        $region36: #{tpu_custom_call.1} parent=31 // pred_fallthru
          _
      $region32: #{tpu_custom_call.1} parent=5 // pred_fallthru
        _
      %p226 = scmp.le.s32.totalorder 1, %s18
      %p227 = scmp.lt.s32.totalorder %s18, 3
      %p228 = pnand %p226, %p227
      %p229 = pneg %p228
      // Predicated region
      $region37: #{tpu_custom_call.1} parent=5 // pred_check
        _
      $region38: #{tpu_custom_call.1} parent=5 // pred_check_branch
        %231 = sbr.rel (%p228) target = $region40
      $region39: #{tpu_custom_call.1} parent=5 // pred_region
        %s232 = ssub.s32 %s18, 1
        %s233 = sand.u32 %s31, 1
        %s234 = scalar_lea.sflag [#allocation3], %s233
        %s235 = sand.u32 %s31, 1
        %s236 = smul.addr %s235, 8
        %s237 = scalar_lea.vmem [#allocation2], %s236
        // Predicated region
        $region41: #{tpu_custom_call.1} parent=39 // pred_check
          %p238 = pneg %p44
        $region42: #{tpu_custom_call.1} parent=39 // pred_check_branch
          %240 = sbr.rel (%p238) target = $region44
        $region43: #{tpu_custom_call.1} parent=39 // pred_region
          %242 = dma.done %s234, 128
        $region44: #{tpu_custom_call.1} parent=39 // pred_fallthru
          _
        // Predicated region
        $region45: #{tpu_custom_call.1} parent=39 // pred_check
          %p243 = pneg %p65
        $region46: #{tpu_custom_call.1} parent=39 // pred_check_branch
          %245 = sbr.rel (%p243) target = $region48
        $region47: #{tpu_custom_call.1} parent=39 // pred_region
          %247 = dma.done [#allocation6], 1024
        $region48: #{tpu_custom_call.1} parent=39 // pred_fallthru
          _
        // Predicated region
        $region49: #{tpu_custom_call.1} parent=39 // pred_check
          %p248 = pneg %p107
        $region50: #{tpu_custom_call.1} parent=39 // pred_check_branch
          %250 = sbr.rel (%p248) target = $region52
        $region51: #{tpu_custom_call.1} parent=39 // pred_region
          %252 = dma.done [#allocation6], 1024
        $region52: #{tpu_custom_call.1} parent=39 // pred_fallthru
          _
        %s253 = sand.u32 %s31, 1
        %s254 = scalar_lea.sflag [#allocation3], %s253
        %s255 = sand.u32 %s31, 1
        %s256 = smul.addr %s255, 8
        %s257 = scalar_lea.vmem [#allocation2], %s256
        %p258 = pneg %p44
        %p259 = pneg %p41
        %p260 = pneg %p65
        %p261 = pneg %p62
        %p262 = pneg %p86
        %p263 = pneg %p83
        %p264 = pneg %p107
        %p265 = pneg %p104
        %p266 = pneg %p128
        %p267 = pneg %p125
        %p268 = pneg %p154
        %p269 = pneg %p151
        %s270 = sand.u32 %s141, 1
        %s271 = scalar_lea.sflag [#allocation4], %s270
        %s272 = sand.u32 %s141, 1
        %s273 = smul.addr %s272, 8
        %s274 = scalar_lea.vmem [#allocation8], %s273
        %v275 = vld [vmem:[%s237] sm:$0xff]
        %v276 = vpack.c.bf16 %v275, %v275
        %v277 = vld [vmem:[#allocation5] sm:$0xf]
        %v278 = vld [vmem:[#allocation5 + $0x4] sm:$0xf]
        %v279 = vld [vmem:[#allocation5 + $0x8] sm:$0xf]
        %v280 = vld [vmem:[#allocation5 + $0xc] sm:$0xf]
        %v281 = vld [vmem:[#allocation5 + $0x10] sm:$0xf]
        %v282 = vld [vmem:[#allocation5 + $0x14] sm:$0xf]
        %v283 = vld [vmem:[#allocation5 + $0x18] sm:$0xf]
        %v284 = vld [vmem:[#allocation5 + $0x1c] sm:$0xf]
        %v285 = vld [vmem:[#allocation5 + $0x20] sm:$0xf]
        %v286 = vld [vmem:[#allocation5 + $0x24] sm:$0xf]
        %v287 = vld [vmem:[#allocation5 + $0x28] sm:$0xf]
        %v288 = vld [vmem:[#allocation5 + $0x2c] sm:$0xf]
        %v289 = vld [vmem:[#allocation5 + $0x30] sm:$0xf]
        %v290 = vld [vmem:[#allocation5 + $0x34] sm:$0xf]
        %v291 = vld [vmem:[#allocation5 + $0x38] sm:$0xf]
        %v292 = vld [vmem:[#allocation5 + $0x3c] sm:$0xf]
        %v293 = vld [vmem:[%s2] sm:$0x1]
        %v295 = vperm.slane %v293, 0
        %v313 = vunpack.c.l.b16 %v277
        %v314 = vunpack.c.l.b16 %v278
        %v315 = vunpack.c.l.b16 %v279
        %v316 = vunpack.c.l.b16 %v280
        %v317 = vunpack.c.l.b16 %v281
        %v318 = vunpack.c.l.b16 %v282
        %v319 = vunpack.c.l.b16 %v283
        %v320 = vunpack.c.l.b16 %v284
        %v321 = vunpack.c.l.b16 %v285
        %v322 = vunpack.c.l.b16 %v286
        %v323 = vunpack.c.l.b16 %v287
        %v324 = vunpack.c.l.b16 %v288
        %v325 = vunpack.c.l.b16 %v289
        %v326 = vunpack.c.l.b16 %v290
        %v327 = vunpack.c.l.b16 %v291
        %v328 = vunpack.c.l.b16 %v292
        %v329 = vpack.c.b16 %v314, %v313
        %v330 = vpack.c.b16 %v316, %v315
        %v331 = vpack.c.b16 %v318, %v317
        %v332 = vpack.c.b16 %v320, %v319
        %v333 = vpack.c.b16 %v322, %v321
        %v334 = vpack.c.b16 %v324, %v323
        %v335 = vpack.c.b16 %v326, %v325
        %v336 = vpack.c.b16 %v328, %v327
        %345 = vmatpush.bf16.msra.mxu0 %v336
        %346 = vmatpush.bf16.msra.mxu0 %v335
        %347 = vmatpush.bf16.msra.mxu0 %v334
        %348 = vmatpush.bf16.msra.mxu0 %v333
        %349 = vmatpush.bf16.msra.mxu0 %v332
        %350 = vmatpush.bf16.msra.mxu0 %v331
        %351 = vmatpush.bf16.msra.mxu0 %v330
        %352 = vmatpush.bf16.msra.mxu0 %v329
        %353 = vmatmul.bf16.gmra.mxu0 %v276
        %v354 = vpop.f32.mrf.mxu0
        %v355 = vadd.f32 %v295, %v354
        %v356 = vpop.f32.mrf.mxu0
        %357 = vdwg.mxu0
        %v358 = vmax.f32 %v355, 0.0
        %v359 = vpack.c.bf16 %v358, %v358
        %v360 = vld [vmem:[#allocation7] sm:$0xf]
        %v361 = vld [vmem:[#allocation7 + $0x4] sm:$0xf]
        %v362 = vld [vmem:[#allocation7 + $0x8] sm:$0xf]
        %v363 = vld [vmem:[#allocation7 + $0xc] sm:$0xf]
        %v364 = vld [vmem:[#allocation7 + $0x10] sm:$0xf]
        %v365 = vld [vmem:[#allocation7 + $0x14] sm:$0xf]
        %v366 = vld [vmem:[#allocation7 + $0x18] sm:$0xf]
        %v367 = vld [vmem:[#allocation7 + $0x1c] sm:$0xf]
        %v368 = vld [vmem:[#allocation7 + $0x20] sm:$0xf]
        %v369 = vld [vmem:[#allocation7 + $0x24] sm:$0xf]
        %v370 = vld [vmem:[#allocation7 + $0x28] sm:$0xf]
        %v371 = vld [vmem:[#allocation7 + $0x2c] sm:$0xf]
        %v372 = vld [vmem:[#allocation7 + $0x30] sm:$0xf]
        %v373 = vld [vmem:[#allocation7 + $0x34] sm:$0xf]
        %v374 = vld [vmem:[#allocation7 + $0x38] sm:$0xf]
        %v375 = vld [vmem:[#allocation7 + $0x3c] sm:$0xf]
        %v376 = vld [vmem:[%s4] sm:$0x1]
        %v378 = vperm.slane %v376, 0
        %v396 = vunpack.c.l.b16 %v360
        %v397 = vunpack.c.l.b16 %v361
        %v398 = vunpack.c.l.b16 %v362
        %v399 = vunpack.c.l.b16 %v363
        %v400 = vunpack.c.l.b16 %v364
        %v401 = vunpack.c.l.b16 %v365
        %v402 = vunpack.c.l.b16 %v366
        %v403 = vunpack.c.l.b16 %v367
        %v404 = vunpack.c.l.b16 %v368
        %v405 = vunpack.c.l.b16 %v369
        %v406 = vunpack.c.l.b16 %v370
        %v407 = vunpack.c.l.b16 %v371
        %v408 = vunpack.c.l.b16 %v372
        %v409 = vunpack.c.l.b16 %v373
        %v410 = vunpack.c.l.b16 %v374
        %v411 = vunpack.c.l.b16 %v375
        %v412 = vpack.c.b16 %v397, %v396
        %v413 = vpack.c.b16 %v399, %v398
        %v414 = vpack.c.b16 %v401, %v400
        %v415 = vpack.c.b16 %v403, %v402
        %v416 = vpack.c.b16 %v405, %v404
        %v417 = vpack.c.b16 %v407, %v406
        %v418 = vpack.c.b16 %v409, %v408
        %v419 = vpack.c.b16 %v411, %v410
        %428 = vmatpush.bf16.msra.mxu0 %v419
        %429 = vmatpush.bf16.msra.mxu0 %v418
        %430 = vmatpush.bf16.msra.mxu0 %v417
        %431 = vmatpush.bf16.msra.mxu0 %v416
        %432 = vmatpush.bf16.msra.mxu0 %v415
        %433 = vmatpush.bf16.msra.mxu0 %v414
        %434 = vmatpush.bf16.msra.mxu0 %v413
        %435 = vmatpush.bf16.msra.mxu0 %v412
        %436 = vmatmul.bf16.gmra.mxu0 %v359
        %v437 = vpop.f32.mrf.mxu0
        %v438 = vadd.f32 %v378, %v437
        %v439 = vpop.f32.mrf.mxu0
        %440 = vdwg.mxu0
        %v441 = vadd.f32 %v438, 1e-07
        %v442 = vmul.f32 %v441, %v441
        %443 = vadd.xlane.f32.xlu0 %v442
        %v444 = vpop.xlane.xlu0 %443
        %v445 = vsub.f32 %v444, 9.6e-13
        %v446 = vrsqrt.pop %v445
        %v447 = vmul.f32 %v446, %v445
        %v448 = vmul.f32 %v447, %v446
        %v449 = vmul.f32 0.5, %v448
        %v450 = vsub.f32 1.5, %v449
        %v451 = vmul.f32 %v446, %v450
        %vm452 = vweird.f32 %v445
        %vm453 = vweird.f32 %v446
        %vm454 = vmor %vm452, %vm453
        %v455 = vsel %vm454, %v446, %v451
        %v456 = vmul.f32 %v438, %v455
        %457 = vst [vmem:[%s274] sm:$0xff] %v456
        %s458 = sand.u32 %s141, 1
        %s459 = scalar_lea.sflag [#allocation4], %s458
        %s460 = sand.u32 %s141, 1
        %s461 = smul.addr %s460, 8
        %s462 = scalar_lea.vmem [#allocation8], %s461
        // Predicated region
        $region53: #{tpu_custom_call.1} parent=39 // pred_check
          %p463 = pneg %p151
        $region54: #{tpu_custom_call.1} parent=39 // pred_check_branch
          %465 = sbr.rel (%p463) target = $region56
        $region55: #{tpu_custom_call.1} parent=39 // pred_region
          %467 = vsyncadd %s459, 0
          %s468 = smul.addr %s23, 8
          %s469 = scalar_lea.hbm %s5, %s468
          %s471 = sshll.u32 %s462, 4
          %s472 = int_to_ptr.vmem [resolvable:$true] %s471
          %s473 = sshll.u32 %s469, 4
          %s474 = int_to_ptr.hbm [resolvable:$true] %s473
          %476 = dma.vmem_to_hbm [thread:$0]  %s472, 128, %s474, %s459
        $region56: #{tpu_custom_call.1} parent=39 // pred_fallthru
          _
      $region40: #{tpu_custom_call.1} parent=5 // pred_fallthru
        _
      %p477 = scmp.le.s32.totalorder 2, %s18
      // Predicated region
      $region57: #{tpu_custom_call.1} parent=5 // pred_check
        %p478 = pneg %p477
      $region58: #{tpu_custom_call.1} parent=5 // pred_check_branch
        %480 = sbr.rel (%p478) target = $region60
      $region59: #{tpu_custom_call.1} parent=5 // pred_region
        %s481 = ssub.s32 %s18, 2
        // Predicated region
        $region61: #{tpu_custom_call.1} parent=59 // pred_check
          %p482 = pneg %p157
        $region62: #{tpu_custom_call.1} parent=59 // pred_check_branch
          %484 = sbr.rel (%p482) target = $region64
        $region63: #{tpu_custom_call.1} parent=59 // pred_region
          %s485 = sand.u32 %s142, 1
          %s486 = scalar_lea.sflag [#allocation4], %s485
          %s487 = sand.u32 %s142, 1
          %s488 = smul.addr %s487, 8
          %s489 = scalar_lea.vmem [#allocation8], %s488
          %491 = dma.done %s486, 128
        $region64: #{tpu_custom_call.1} parent=59 // pred_fallthru
          _
      $region60: #{tpu_custom_call.1} parent=5 // pred_fallthru
        _
    $region6: #{tpu_custom_call.1} parent=1 // loop_footer
      %s22 = sadd.s32 1, %s18
    $region7: #{tpu_custom_call.1} parent=1 // loop_footer_branch
      %17 = sbr.rel target = $region3
    $region8: #{tpu_custom_call.1} parent=1 // loop_exit
      _
    %492 = vsyncpa [#allocation3], 1
    %s493 = scalar_lea.sflag [#allocation3], 1
    %494 = vsyncpa %s493, 1
    %495 = vsyncpa [#allocation6], 1
    %496 = vsyncpa [#allocation4], 1
    %s497 = scalar_lea.sflag [#allocation4], 1
    %498 = vsyncpa %s497, 1

</llo_original>
